<compile_context>
chip_gen: v7x
topology: tpu7x:2x2x1
jax: 0.10.0
libtpu: 0.0.40
codegen_flags: <defaults>
</compile_context>

<pallas_src>
import jax
import jax.numpy as jnp
from jax import lax
from jax.experimental import pallas as pl
from jax.experimental.pallas import tpu as pltpu


# ----------------------------- Pallas kernel --------------------------------
def make_mlp_kernel(num_hidden):
    """Kernel over refs: (x, w1, b1, ..., wk, bk, w_out, b_out, o).

    Weights are (out, in) bf16, biases (out, 1) fp32.  All intermediates are
    feature-major (H, TB): lane-dense along the batch-tile dimension.
    """
    def kernel(*refs):
        x_ref = refs[0]
        o_ref = refs[-1]
        wb = refs[1:-1]

        x = x_ref[...].astype(jnp.bfloat16)                     # (TB, in_dim)

        # Layer 1: (H1, in) x (TB, in)^T -> (H1, TB), fp32 accumulate.
        w0_ref, b0_ref = wb[0], wb[1]
        h = lax.dot_general(
            w0_ref[...], x,
            dimension_numbers=(((1,), (1,)), ((), ())),
            preferred_element_type=jnp.float32)
        h = jnp.maximum(h + b0_ref[...], 0.0)                   # Linear(+BN) -> ReLU
        h = h.astype(jnp.bfloat16)

        # Remaining hidden layers: (H_{k+1}, H_k) x (H_k, TB) -> (H_{k+1}, TB).
        for li in range(1, num_hidden):
            w_ref, b_ref = wb[2 * li], wb[2 * li + 1]
            h = jnp.dot(w_ref[...], h, preferred_element_type=jnp.float32)
            h = jnp.maximum(h + b_ref[...], 0.0)                # Dropout(eval) = id
            h = h.astype(jnp.bfloat16)

        # Output layer: (out_dim, H_last) x (H_last, TB) -> (out_dim, TB), sigmoid.
        w_out_ref, b_out_ref = wb[2 * num_hidden], wb[2 * num_hidden + 1]
        y = jnp.dot(w_out_ref[...], h, preferred_element_type=jnp.float32)
        o_ref[...] = jax.nn.sigmoid(y + b_out_ref[...])
    return kernel


# ------------------------------- wrapper -------------------------------------
def _choose_tile(B, tb):
    if B <= tb:
        return B, 1                      # block == full array dims -> always legal
    TB = max((tb // 128) * 128, 128)     # lane-dense output tiles, >=2 grid points
    return TB, pl.cdiv(B, TB)


def epistasis_detector_forward(x, packed_params, tb=8192):
    """Fused MLP forward.

    x: (B, in_dim), bf16 preferred (fp32 accepted; cast happens in-kernel).
    packed_params: pack_params() output — (w1, b1, ..., w_out, b_out) with
    weights (out, in) bf16 and biases (out, 1) fp32, eval-mode BN folded in.
    """
    num_layers = len(packed_params) // 2
    num_hidden = num_layers - 1
    assert num_hidden >= 1, "at least one hidden layer expected"

    B, in_dim = x.shape
    out_dim = packed_params[-2].shape[0]
    TB, num_tiles = _choose_tile(B, tb)

    kernel_args = [x]
    in_specs = [pl.BlockSpec((TB, in_dim), lambda i: (i, 0))]
    dims = [in_dim]
    for li in range(num_layers):
        w, b = packed_params[2 * li], packed_params[2 * li + 1]
        kernel_args += [w, b]
        in_specs += [pl.BlockSpec(w.shape, lambda i: (0, 0)),   # VMEM-resident
                     pl.BlockSpec(b.shape, lambda i: (0, 0))]
        dims.append(w.shape[0])

    flops = 2 * B * sum(dims[k] * dims[k + 1] for k in range(num_layers))
    bytes_accessed = int(x.size) * x.dtype.itemsize + B * out_dim * 4
    bytes_accessed += sum(int(a.size) * a.dtype.itemsize for a in kernel_args[1:])

    out_fm = pl.pallas_call(
        make_mlp_kernel(num_hidden),
        out_shape=jax.ShapeDtypeStruct((out_dim, B), jnp.float32),
        grid=(num_tiles,),
        in_specs=in_specs,
        out_specs=pl.BlockSpec((out_dim, TB), lambda i: (0, i)),
        compiler_params=pltpu.CompilerParams(
            dimension_semantics=("parallel",),
            vmem_limit_bytes=32 * 1024 * 1024),
        cost_estimate=pl.CostEstimate(
            flops=flops, transcendentals=B, bytes_accessed=int(bytes_accessed)),
    )(*kernel_args)

    return out_fm.T                      # (B, out_dim)


# --------------------------- parameter construction --------------------------
def fold_bn_into_linear(w, b, gamma, beta, running_mean, running_var, eps=1e-5):
    """Fold eval-mode BatchNorm1d into the preceding Linear.
    w: (out, in)  b: (out,)  ->  w_eff (out, in), b_eff (out,)."""
    scale = gamma / jnp.sqrt(running_var + eps)
    w_eff = w * scale[:, None]
    b_eff = (b - running_mean) * scale + beta
    return w_eff, b_eff


def init_params(key, input_dim, hidden_dims, output_dim):
    """Synthetic fp32 params in PyTorch (out, in)/(out,) layout, BN folded (eval)."""
    dims = [input_dim] + list(hidden_dims)
    params = []
    keys = jax.random.split(key, 2 * (len(hidden_dims) + 1))
    ki = 0
    for li in range(len(hidden_dims)):
        fan_in, fan_out = dims[li], dims[li + 1]
        bound = 1.0 / float(fan_in) ** 0.5
        w = jax.random.uniform(keys[ki], (fan_out, fan_in), jnp.float32, -bound, bound); ki += 1
        b = jax.random.uniform(keys[ki], (fan_out,), jnp.float32, -bound, bound); ki += 1
        gamma = jnp.ones((fan_out,), jnp.float32)
        beta = jnp.zeros((fan_out,), jnp.float32)
        rmean = jnp.zeros((fan_out,), jnp.float32)
        rvar = jnp.ones((fan_out,), jnp.float32)
        w, b = fold_bn_into_linear(w, b, gamma, beta, rmean, rvar)
        params += [w, b]
    fan_in = dims[-1]
    bound = 1.0 / float(fan_in) ** 0.5
    w = jax.random.uniform(keys[ki], (output_dim, fan_in), jnp.float32, -bound, bound); ki += 1
    b = jax.random.uniform(keys[ki], (output_dim,), jnp.float32, -bound, bound); ki += 1
    params += [w, b]
    return tuple(params)


def pack_params(params):
    """One-time packing for the kernel: weights (out,in) bf16, biases (out,1) fp32."""
    packed = []
    for i in range(0, len(params), 2):
        w, b = params[i], params[i + 1]
        packed.append(w.astype(jnp.bfloat16))
        packed.append(b.reshape(-1, 1).astype(jnp.float32))
    return tuple(packed)


# ------------------------------ reference (JAX) ------------------------------
def reference_forward(x, params):
    num_hidden = len(params) // 2 - 1
    h = x
    for li in range(num_hidden):
        w, b = params[2 * li], params[2 * li + 1]
        h = jnp.maximum(h @ w.T + b, 0.0)
    return jax.nn.sigmoid(h @ params[-2].T + params[-1])


# ----------------------------------- main ------------------------------------
if __name__ == "__main__":
    key = jax.random.PRNGKey(0)
    k_x, k_p = jax.random.split(key)

    batch = 8
    input_dim = 32
    hidden_dims = [64, 32]
    output_dim = 1
    dropout_rate = 0.5  # identity in eval mode

    x = jax.random.normal(k_x, (batch, input_dim), jnp.float32)
    params = init_params(k_p, input_dim, hidden_dims, output_dim)
    packed = pack_params(params)            # pre-cast/pre-pack once

    # Caller provides bf16 input (documented precision deviation from fp32 PyTorch).
    x_bf = x.astype(jnp.bfloat16)

    out = jax.block_until_ready(epistasis_detector_forward(x_bf, packed))
    ref = reference_forward(x, params)

    assert out.shape == (batch, output_dim)
    # bf16 inputs/weights with fp32 accumulation -> loosened tolerance vs fp32 reference
    assert jnp.allclose(out, ref, atol=2e-2, rtol=2e-2), (
        "mismatch vs JAX reference, max |diff| = "
        f"{float(jnp.max(jnp.abs(out - ref)))}")

    print("KERNEL_OK")
</pallas_src>

<mosaic_0001>
module attributes {stable_mosaic.version = 11 : i64} {
  func.func @kernel(%arg0: i32, %arg1: memref<8x32xbf16, #tpu.memory_space<vmem>>, %arg2: memref<64x32xbf16, #tpu.memory_space<vmem>>, %arg3: memref<64x1xf32, #tpu.memory_space<vmem>>, %arg4: memref<32x64xbf16, #tpu.memory_space<vmem>>, %arg5: memref<32x1xf32, #tpu.memory_space<vmem>>, %arg6: memref<1x32xbf16, #tpu.memory_space<vmem>>, %arg7: memref<1x1xf32, #tpu.memory_space<vmem>>, %arg8: memref<1x8xf32, #tpu.memory_space<vmem>>) attributes {dimension_semantics = [#tpu.dimension_semantics<parallel>], iteration_bounds = array<i64: 1>, scalar_prefetch = 0 : i64, scratch_operands = 0 : i64, tpu.core_type = #tpu.core_type<tc>, window_params = [{transform_indices = @transform_0, window_bounds = array<i64: 8, 32>}, {pipeline_mode = #tpu.pipeline_mode<synchronous>, transform_indices = @transform_1, window_bounds = array<i64: 64, 32>}, {pipeline_mode = #tpu.pipeline_mode<synchronous>, transform_indices = @transform_2, window_bounds = array<i64: 64, 1>}, {pipeline_mode = #tpu.pipeline_mode<synchronous>, transform_indices = @transform_3, window_bounds = array<i64: 32, 64>}, {pipeline_mode = #tpu.pipeline_mode<synchronous>, transform_indices = @transform_4, window_bounds = array<i64: 32, 1>}, {pipeline_mode = #tpu.pipeline_mode<synchronous>, transform_indices = @transform_5, window_bounds = array<i64: 1, 32>}, {pipeline_mode = #tpu.pipeline_mode<synchronous>, transform_indices = @transform_6, window_bounds = array<i64: 1, 1>}, {transform_indices = @transform_7, window_bounds = array<i64: 1, 8>}]} {
    %c0 = arith.constant 0 : index
    %c0_0 = arith.constant 0 : index
    %0 = vector.load %arg1[%c0, %c0_0] : memref<8x32xbf16, #tpu.memory_space<vmem>>, vector<8x32xbf16>
    %c0_1 = arith.constant 0 : index
    %c0_2 = arith.constant 0 : index
    %1 = vector.load %arg2[%c0_1, %c0_2] : memref<64x32xbf16, #tpu.memory_space<vmem>>, vector<64x32xbf16>
    %cst = arith.constant dense<0.000000e+00> : vector<64x8xf32>
    %2 = tpu.matmul %1, %0, %cst {dimension_numbers = #tpu.dot_dimension_numbers<[1], [1], [0], [0], [0, 0, 1, 0], [], []>} : vector<64x32xbf16>, vector<8x32xbf16>, vector<64x8xf32> -> vector<64x8xf32>
    %c0_3 = arith.constant 0 : index
    %c0_4 = arith.constant 0 : index
    %3 = vector.load %arg3[%c0_3, %c0_4] : memref<64x1xf32, #tpu.memory_space<vmem>>, vector<64x1xf32>
    %4 = vector.broadcast %3 : vector<64x1xf32> to vector<64x8xf32>
    %5 = arith.addf %2, %4 : vector<64x8xf32>
    %cst_5 = arith.constant 0.000000e+00 : f32
    %6 = vector.broadcast %cst_5 : f32 to vector<64x8xf32>
    %7 = arith.maximumf %5, %6 : vector<64x8xf32>
    %8 = arith.truncf %7 : vector<64x8xf32> to vector<64x8xbf16>
    %c0_6 = arith.constant 0 : index
    %c0_7 = arith.constant 0 : index
    %9 = vector.load %arg4[%c0_6, %c0_7] : memref<32x64xbf16, #tpu.memory_space<vmem>>, vector<32x64xbf16>
    %cst_8 = arith.constant dense<0.000000e+00> : vector<32x8xf32>
    %10 = tpu.matmul %9, %8, %cst_8 {dimension_numbers = #tpu.dot_dimension_numbers<[1], [0], [0], [1], [0, 0, 1, 1], [], []>} : vector<32x64xbf16>, vector<64x8xbf16>, vector<32x8xf32> -> vector<32x8xf32>
    %c0_9 = arith.constant 0 : index
    %c0_10 = arith.constant 0 : index
    %11 = vector.load %arg5[%c0_9, %c0_10] : memref<32x1xf32, #tpu.memory_space<vmem>>, vector<32x1xf32>
    %12 = vector.broadcast %11 : vector<32x1xf32> to vector<32x8xf32>
    %13 = arith.addf %10, %12 : vector<32x8xf32>
    %cst_11 = arith.constant 0.000000e+00 : f32
    %14 = vector.broadcast %cst_11 : f32 to vector<32x8xf32>
    %15 = arith.maximumf %13, %14 : vector<32x8xf32>
    %16 = arith.truncf %15 : vector<32x8xf32> to vector<32x8xbf16>
    %c0_12 = arith.constant 0 : index
    %c0_13 = arith.constant 0 : index
    %17 = vector.load %arg6[%c0_12, %c0_13] : memref<1x32xbf16, #tpu.memory_space<vmem>>, vector<1x32xbf16>
    %cst_14 = arith.constant dense<0.000000e+00> : vector<1x8xf32>
    %18 = tpu.matmul %17, %16, %cst_14 {dimension_numbers = #tpu.dot_dimension_numbers<[1], [0], [0], [1], [0, 0, 1, 1], [], []>} : vector<1x32xbf16>, vector<32x8xbf16>, vector<1x8xf32> -> vector<1x8xf32>
    %c0_15 = arith.constant 0 : index
    %c0_16 = arith.constant 0 : index
    %19 = vector.load %arg7[%c0_15, %c0_16] : memref<1x1xf32, #tpu.memory_space<vmem>>, vector<1x1xf32>
    %20 = vector.broadcast %19 : vector<1x1xf32> to vector<1x8xf32>
    %21 = arith.addf %18, %20 : vector<1x8xf32>
    %22 = arith.negf %21 : vector<1x8xf32>
    %23 = math.exp %22 : vector<1x8xf32>
    %cst_17 = arith.constant 1.000000e+00 : f32
    %24 = vector.broadcast %cst_17 : f32 to vector<1x8xf32>
    %25 = arith.addf %24, %23 : vector<1x8xf32>
    %26 = arith.divf %24, %25 : vector<1x8xf32>
    %c0_18 = arith.constant 0 : index
    %c0_19 = arith.constant 0 : index
    %27 = vector.load %arg8[%c0_18, %c0_19] : memref<1x8xf32, #tpu.memory_space<vmem>>, vector<1x8xf32>
    tpu.vector_store %arg8[%c0_18, %c0_19], %26 {strides = array<i32>} : memref<1x8xf32, #tpu.memory_space<vmem>>, vector<1x8xf32>,
    return
  }
  func.func @transform_0(%arg0: i32) -> (i32, i32) {
    %c0_i32 = arith.constant 0 : i32
    %c0_i32_0 = arith.constant 0 : i32
    return %arg0, %c0_i32 : i32, i32
  }
  func.func @transform_1(%arg0: i32) -> (i32, i32) {
    %c0_i32 = arith.constant 0 : i32
    %c0_i32_0 = arith.constant 0 : i32
    %c0_i32_1 = arith.constant 0 : i32
    return %c0_i32, %c0_i32_0 : i32, i32
  }
  func.func @transform_2(%arg0: i32) -> (i32, i32) {
    %c0_i32 = arith.constant 0 : i32
    %c0_i32_0 = arith.constant 0 : i32
    %c0_i32_1 = arith.constant 0 : i32
    return %c0_i32, %c0_i32_0 : i32, i32
  }
  func.func @transform_3(%arg0: i32) -> (i32, i32) {
    %c0_i32 = arith.constant 0 : i32
    %c0_i32_0 = arith.constant 0 : i32
    %c0_i32_1 = arith.constant 0 : i32
    return %c0_i32, %c0_i32_0 : i32, i32
  }
  func.func @transform_4(%arg0: i32) -> (i32, i32) {
    %c0_i32 = arith.constant 0 : i32
    %c0_i32_0 = arith.constant 0 : i32
    %c0_i32_1 = arith.constant 0 : i32
    return %c0_i32, %c0_i32_0 : i32, i32
  }
  func.func @transform_5(%arg0: i32) -> (i32, i32) {
    %c0_i32 = arith.constant 0 : i32
    %c0_i32_0 = arith.constant 0 : i32
    %c0_i32_1 = arith.constant 0 : i32
    return %c0_i32, %c0_i32_0 : i32, i32
  }
  func.func @transform_6(%arg0: i32) -> (i32, i32) {
    %c0_i32 = arith.constant 0 : i32
    %c0_i32_0 = arith.constant 0 : i32
    %c0_i32_1 = arith.constant 0 : i32
    return %c0_i32, %c0_i32_0 : i32, i32
  }
  func.func @transform_7(%arg0: i32) -> (i32, i32) {
    %c0_i32 = arith.constant 0 : i32
    %c0_i32_0 = arith.constant 0 : i32
    return %c0_i32, %arg0 : i32, i32
  }
}

</mosaic_0001>

<llo_original>
// kernel: tpu_custom_call.1
$region0: #{tpu_custom_call.1}
  #allocation0 [shape = 'u32[]', space=smem, size = 0x4, offset = 0x4, fixed_abs, tag = 'smem constant byte address 0x4 - core index']
  #allocation1 [shape = 'u32[144,128]{1,0:T(1,128)}', space=vmem, size = 0x12000, scoped, tag = 'internal scratch']
  #allocation2 [shape = 'f32[1,1]{1,0:T(1,128)S(1)}', space=vmem, size = 0x200, scoped, tag = 'scoped memory for tpu_custom_call.1']
  %s0 = inlined_call_operand.vmem [shape: bf16[8,32], index: 0, kind: input, shape index: {}]
  %s1 = inlined_call_operand.vmem [shape: bf16[64,32], index: 1, kind: input, shape index: {}]
  %s2 = inlined_call_operand.vmem [shape: f32[64,1], index: 2, kind: input, shape index: {}]
  %s3 = inlined_call_operand.vmem [shape: bf16[32,64], index: 3, kind: input, shape index: {}]
  %s4 = inlined_call_operand.vmem [shape: f32[32,1], index: 4, kind: input, shape index: {}]
  %s5 = inlined_call_operand.vmem [shape: bf16[1,32], index: 5, kind: input, shape index: {}]
  %s6 = inlined_call_operand.<no memory space> [shape: f32[1,1], index: 6, kind: input, shape index: {}]
  %s7 = inlined_call_operand.hbm [shape: f32[1,8], index: 7, kind: output, shape index: {}]
  %s8 = sld [smem:[#allocation0]]
  $region38: #{tpu_custom_call.1} parent=0
    _
  %s10 = ssub.s32 1, %s8
  %s11 = scalar_select 0, %s10, %s8
  %v12 = vstv %s6
  %13 = vst [vmem:[#allocation2] sm:$0x1] %v12
  $region1: #{tpu_custom_call.1} parent=0
    #allocation3 [shape = 'u8[512]{0}', space=vmem, size = 0x400, scoped, tag = 'output window, operand 0, single buffered']
    #allocation4 [shape = 's32[1]{0}', space=sflag, size = 0x4, scoped, tag = 'scoped memory for tpu_custom_call.1']
    %14 = vsyncpa [#allocation4], 0
    // Predicated region
    $region2: #{tpu_custom_call.1} parent=1 // pred_check
      _
    $region3: #{tpu_custom_call.1} parent=1 // pred_check_branch
      %16 = sbr.rel (0) target = $region5
    $region4: #{tpu_custom_call.1} parent=1 // pred_region
      _
    $region5: #{tpu_custom_call.1} parent=1 // pred_fallthru
      _
    // Predicated region
    $region6: #{tpu_custom_call.1} parent=1 // pred_check
      _
    $region7: #{tpu_custom_call.1} parent=1 // pred_check_branch
      %18 = sbr.rel (0) target = $region9
    $region8: #{tpu_custom_call.1} parent=1 // pred_region
      _
    $region9: #{tpu_custom_call.1} parent=1 // pred_fallthru
      _
    // Predicated region
    $region10: #{tpu_custom_call.1} parent=1 // pred_check
      _
    $region11: #{tpu_custom_call.1} parent=1 // pred_check_branch
      %20 = sbr.rel (0) target = $region13
    $region12: #{tpu_custom_call.1} parent=1 // pred_region
      _
    $region13: #{tpu_custom_call.1} parent=1 // pred_fallthru
      _
    // Predicated region
    $region14: #{tpu_custom_call.1} parent=1 // pred_check
      _
    $region15: #{tpu_custom_call.1} parent=1 // pred_check_branch
      %22 = sbr.rel (0) target = $region17
    $region16: #{tpu_custom_call.1} parent=1 // pred_region
      _
    $region17: #{tpu_custom_call.1} parent=1 // pred_fallthru
      _
    // Predicated region
    $region18: #{tpu_custom_call.1} parent=1 // pred_check
      _
    $region19: #{tpu_custom_call.1} parent=1 // pred_check_branch
      %24 = sbr.rel (0) target = $region21
    $region20: #{tpu_custom_call.1} parent=1 // pred_region
      _
    $region21: #{tpu_custom_call.1} parent=1 // pred_fallthru
      _
    // Predicated region
    $region22: #{tpu_custom_call.1} parent=1 // pred_check
      _
    $region23: #{tpu_custom_call.1} parent=1 // pred_check_branch
      %26 = sbr.rel (0) target = $region25
    $region24: #{tpu_custom_call.1} parent=1 // pred_region
      _
    $region25: #{tpu_custom_call.1} parent=1 // pred_fallthru
      _
    // Predicated region
    $region26: #{tpu_custom_call.1} parent=1 // pred_check
      _
    $region27: #{tpu_custom_call.1} parent=1 // pred_check_branch
      %28 = sbr.rel (0) target = $region29
    $region28: #{tpu_custom_call.1} parent=1 // pred_region
      _
    $region29: #{tpu_custom_call.1} parent=1 // pred_fallthru
      _
    %v30 = vld [vmem:[%s0] sm:$0xf]
    %v31 = vld [vmem:[%s1] sm:$0xf]
    %v32 = vld [vmem:[%s1 + $0x4] sm:$0xf]
    %v33 = vld [vmem:[%s1 + $0x8] sm:$0xf]
    %v34 = vld [vmem:[%s1 + $0xc] sm:$0xf]
    %v35 = vld [vmem:[%s1 + $0x10] sm:$0xf]
    %v36 = vld [vmem:[%s1 + $0x14] sm:$0xf]
    %v37 = vld [vmem:[%s1 + $0x18] sm:$0xf]
    %v38 = vld [vmem:[%s1 + $0x1c] sm:$0xf]
    %v39 = vld [vmem:[%s2] sm:$0xff]
    %v40 = vld [vmem:[%s2 + $0x8] sm:$0xff]
    %v41 = vld [vmem:[%s2 + $0x10] sm:$0xff]
    %v42 = vld [vmem:[%s2 + $0x18] sm:$0xff]
    %v43 = vld [vmem:[%s2 + $0x20] sm:$0xff]
    %v44 = vld [vmem:[%s2 + $0x28] sm:$0xff]
    %v45 = vld [vmem:[%s2 + $0x30] sm:$0xff]
    %v46 = vld [vmem:[%s2 + $0x38] sm:$0xff]
    %48 = vset.pattern.permute.xlu0 0
    %49 = vperm.xlu0 %48, %v39
    %v50 = vpop.permute.xlu0 %49
    %53 = vset.pattern.permute.xlu0 0
    %54 = vperm.xlu0 %53, %v40
    %v55 = vpop.permute.xlu0 %54
    %58 = vset.pattern.permute.xlu0 0
    %59 = vperm.xlu0 %58, %v41
    %v60 = vpop.permute.xlu0 %59
    %63 = vset.pattern.permute.xlu0 0
    %64 = vperm.xlu0 %63, %v42
    %v65 = vpop.permute.xlu0 %64
    %68 = vset.pattern.permute.xlu0 0
    %69 = vperm.xlu0 %68, %v43
    %v70 = vpop.permute.xlu0 %69
    %73 = vset.pattern.permute.xlu0 0
    %74 = vperm.xlu0 %73, %v44
    %v75 = vpop.permute.xlu0 %74
    %78 = vset.pattern.permute.xlu0 0
    %79 = vperm.xlu0 %78, %v45
    %v80 = vpop.permute.xlu0 %79
    %83 = vset.pattern.permute.xlu0 0
    %84 = vperm.xlu0 %83, %v46
    %v85 = vpop.permute.xlu0 %84
    %v95 = vunpack.c.l.b16 %v31
    %v96 = vunpack.c.l.b16 %v32
    %v97 = vunpack.c.l.b16 %v33
    %v98 = vunpack.c.l.b16 %v34
    %v99 = vunpack.c.l.b16 %v35
    %v100 = vunpack.c.l.b16 %v36
    %v101 = vunpack.c.l.b16 %v37
    %v102 = vunpack.c.l.b16 %v38
    %v103 = vpack.c.b16 %v96, %v95
    %v104 = vpack.c.b16 %v98, %v97
    %v105 = vpack.c.b16 %v100, %v99
    %v106 = vpack.c.b16 %v102, %v101
    %vm107 = vcmask 261120
    %v109 = vsel %vm107, %v103, 0
    %v112 = vsel %vm107, %v104, 0
    %v115 = vsel %vm107, %v105, 0
    %v118 = vsel %vm107, %v106, 0
    %v121 = vsel %vm107, %v30, 0
    %123 = vmatprep.subr.bf16.mxu0 0
    %124 = vmatpush1.bf16.xpose.msra.mxu0 %v121
    %125 = vmatprep.subr.bf16.mxu0 0
    %126 = vmatpush1.bf16.xpose.msra.mxu0 0
    %127 = vmatprep.subr.bf16.mxu0 0
    %128 = vmatpush1.bf16.xpose.msra.mxu0 0
    %129 = vmatprep.subr.bf16.mxu0 0
    %130 = vmatpush1.bf16.xpose.msra.mxu0 0
    %131 = vmatprep.subr.bf16.mxu0 0
    %132 = vmatpush1.bf16.xpose.msra.mxu0 0
    %133 = vmatprep.subr.bf16.mxu0 0
    %134 = vmatpush1.bf16.xpose.msra.mxu0 0
    %135 = vmatprep.subr.bf16.mxu0 0
    %136 = vmatpush1.bf16.xpose.msra.mxu0 0
    %137 = vmatprep.subr.bf16.mxu0 0
    %138 = vmatpush1.bf16.xpose.msra.mxu0 0
    %139 = vmatprep.subr.bf16.mxu0 0
    %140 = vmatpush1.bf16.xpose.msra.mxu0 0
    %141 = vmatprep.subr.bf16.mxu0 0
    %142 = vmatpush1.bf16.xpose.msra.mxu0 0
    %143 = vmatprep.subr.bf16.mxu0 0
    %144 = vmatpush1.bf16.xpose.msra.mxu0 0
    %145 = vmatprep.subr.bf16.mxu0 0
    %146 = vmatpush1.bf16.xpose.msra.mxu0 0
    %147 = vmatprep.subr.bf16.mxu0 0
    %148 = vmatpush1.bf16.xpose.msra.mxu0 0
    %149 = vmatprep.subr.bf16.mxu0 0
    %150 = vmatpush1.bf16.xpose.msra.mxu0 0
    %151 = vmatprep.subr.bf16.mxu0 0
    %152 = vmatpush1.bf16.xpose.msra.mxu0 0
    %153 = vmatprep.subr.bf16.mxu0 0
    %154 = vmatpush1.bf16.xpose.msra.mxu0 0
    %155 = vmatprep.mubr.bf16.mxu0 0
    %156 = vmatmul.mubr.bf16.gmra.mrb[0].mxu0 %v109
    %v157 = vpop.f32.mrb[0].mxu0
    %v158 = vadd.f32 %v50, %v157
    %v159 = vpop.f32.mrb[0].mxu0
    %v160 = vpop.f32.mrb[0].mxu0
    %v161 = vadd.f32 %v55, %v160
    %v162 = vpop.f32.mrb[0].mxu0
    %163 = vmatprep.mubr.bf16.mxu0 0
    %164 = vmatmul.mubr.bf16.gmra.mrb[0].mxu0 %v112
    %v165 = vpop.f32.mrb[0].mxu0
    %v166 = vadd.f32 %v60, %v165
    %v167 = vpop.f32.mrb[0].mxu0
    %v168 = vpop.f32.mrb[0].mxu0
    %v169 = vadd.f32 %v65, %v168
    %v170 = vpop.f32.mrb[0].mxu0
    %171 = vmatprep.mubr.bf16.mxu0 0
    %172 = vmatmul.mubr.bf16.gmra.mrb[0].mxu0 %v115
    %v173 = vpop.f32.mrb[0].mxu0
    %v174 = vadd.f32 %v70, %v173
    %v175 = vpop.f32.mrb[0].mxu0
    %v176 = vpop.f32.mrb[0].mxu0
    %v177 = vadd.f32 %v75, %v176
    %v178 = vpop.f32.mrb[0].mxu0
    %179 = vmatprep.mubr.bf16.mxu0 0
    %180 = vmatmul.mubr.bf16.gmra.mrb[0].mxu0 %v118
    %v181 = vpop.f32.mrb[0].mxu0
    %v182 = vadd.f32 %v80, %v181
    %v183 = vpop.f32.mrb[0].mxu0
    %v184 = vpop.f32.mrb[0].mxu0
    %v185 = vadd.f32 %v85, %v184
    %v186 = vpop.f32.mrb[0].mxu0
    %187 = vdwg.mxu0
    %v188 = vmax.f32 %v158, 0.0
    %v189 = vmax.f32 %v161, 0.0
    %v190 = vmax.f32 %v166, 0.0
    %v191 = vmax.f32 %v169, 0.0
    %v192 = vmax.f32 %v174, 0.0
    %v193 = vmax.f32 %v177, 0.0
    %v194 = vmax.f32 %v182, 0.0
    %v195 = vmax.f32 %v185, 0.0
    %v196 = vpack.c.bf16 %v189, %v188
    %v197 = vpack.c.bf16 %v191, %v190
    %v198 = vpack.c.bf16 %v193, %v192
    %v199 = vpack.c.bf16 %v195, %v194
    %v200 = vld [vmem:[%s3] sm:$0xf]
    %v201 = vld [vmem:[%s3 + $0x4] sm:$0xf]
    %v202 = vld [vmem:[%s3 + $0x8] sm:$0xf]
    %v203 = vld [vmem:[%s3 + $0xc] sm:$0xf]
    %v204 = vld [vmem:[%s4] sm:$0xff]
    %v205 = vld [vmem:[%s4 + $0x8] sm:$0xff]
    %v206 = vld [vmem:[%s4 + $0x10] sm:$0xff]
    %v207 = vld [vmem:[%s4 + $0x18] sm:$0xff]
    %209 = vset.pattern.permute.xlu0 0
    %210 = vperm.xlu0 %209, %v204
    %v211 = vpop.permute.xlu0 %210
    %214 = vset.pattern.permute.xlu0 0
    %215 = vperm.xlu0 %214, %v205
    %v216 = vpop.permute.xlu0 %215
    %219 = vset.pattern.permute.xlu0 0
    %220 = vperm.xlu0 %219, %v206
    %v221 = vpop.permute.xlu0 %220
    %224 = vset.pattern.permute.xlu0 0
    %225 = vperm.xlu0 %224, %v207
    %v226 = vpop.permute.xlu0 %225
    %v232 = vunpack.c.l.b16 %v200
    %v233 = vunpack.c.l.b16 %v201
    %v234 = vunpack.c.l.b16 %v202
    %v235 = vunpack.c.l.b16 %v203
    %v236 = vpack.c.b16 %v233, %v232
    %v237 = vpack.c.b16 %v235, %v234
    %vm238 = vcmask 523264
    %v240 = vsel %vm238, %v236, 0
    %v243 = vsel %vm238, %v237, 0
    %245 = vmatprep.subr.bf16.mxu0 0
    %246 = vmatpush1.bf16.msra.mxu0 %v196
    %247 = vmatprep.subr.bf16.mxu0 0
    %248 = vmatpush1.bf16.msra.mxu0 %v197
    %249 = vmatprep.subr.bf16.mxu0 0
    %250 = vmatpush1.bf16.msra.mxu0 %v198
    %251 = vmatprep.subr.bf16.mxu0 0
    %252 = vmatpush1.bf16.msra.mxu0 %v199
    %253 = vmatprep.subr.bf16.mxu0 0
    %254 = vmatpush1.bf16.msra.mxu0 0
    %255 = vmatprep.subr.bf16.mxu0 0
    %256 = vmatpush1.bf16.msra.mxu0 0
    %257 = vmatprep.subr.bf16.mxu0 0
    %258 = vmatpush1.bf16.msra.mxu0 0
    %259 = vmatprep.subr.bf16.mxu0 0
    %260 = vmatpush1.bf16.msra.mxu0 0
    %261 = vmatprep.subr.bf16.mxu0 0
    %262 = vmatpush1.bf16.msra.mxu0 0
    %263 = vmatprep.subr.bf16.mxu0 0
    %264 = vmatpush1.bf16.msra.mxu0 0
    %265 = vmatprep.subr.bf16.mxu0 0
    %266 = vmatpush1.bf16.msra.mxu0 0
    %267 = vmatprep.subr.bf16.mxu0 0
    %268 = vmatpush1.bf16.msra.mxu0 0
    %269 = vmatprep.subr.bf16.mxu0 0
    %270 = vmatpush1.bf16.msra.mxu0 0
    %271 = vmatprep.subr.bf16.mxu0 0
    %272 = vmatpush1.bf16.msra.mxu0 0
    %273 = vmatprep.subr.bf16.mxu0 0
    %274 = vmatpush1.bf16.msra.mxu0 0
    %275 = vmatprep.subr.bf16.mxu0 0
    %276 = vmatpush1.bf16.msra.mxu0 0
    %277 = vmatprep.mubr.bf16.mxu0 0
    %278 = vmatmul.mubr.bf16.gmra.mrb[0].mxu0 %v240
    %v279 = vpop.f32.mrb[0].mxu0
    %v280 = vadd.f32 %v211, %v279
    %v281 = vpop.f32.mrb[0].mxu0
    %v282 = vpop.f32.mrb[0].mxu0
    %v283 = vadd.f32 %v216, %v282
    %v284 = vpop.f32.mrb[0].mxu0
    %285 = vmatprep.mubr.bf16.mxu0 0
    %286 = vmatmul.mubr.bf16.gmra.mrb[0].mxu0 %v243
    %v287 = vpop.f32.mrb[0].mxu0
    %v288 = vadd.f32 %v221, %v287
    %v289 = vpop.f32.mrb[0].mxu0
    %v290 = vpop.f32.mrb[0].mxu0
    %v291 = vadd.f32 %v226, %v290
    %v292 = vpop.f32.mrb[0].mxu0
    %293 = vdwg.mxu0
    %v294 = vmax.f32 %v280, 0.0
    %v295 = vmax.f32 %v283, 0.0
    %v296 = vmax.f32 %v288, 0.0
    %v297 = vmax.f32 %v291, 0.0
    %v298 = vpack.c.bf16 %v295, %v294
    %v299 = vpack.c.bf16 %v297, %v296
    %v300 = vld [vmem:[%s5] sm:$0x1]
    %v301 = vld [vmem:[#allocation2] sm:$0x1]
    %303 = vset.pattern.permute.xlu0 0
    %304 = vperm.xlu0 %303, %v301
    %v305 = vpop.permute.xlu0 %304
    %v307 = vlaneseq
    %v308 = vshrl.u32 %v307, 7
    %v309 = vsub.s32 0, %v308
    %v310 = vrot.slane %v305, %v309
    %v312 = vsel %vm107, %v300, 0
    %314 = vmatprep.subr.bf16.mxu0 0
    %315 = vmatpush1.bf16.msra.mxu0 %v298
    %316 = vmatprep.subr.bf16.mxu0 0
    %317 = vmatpush1.bf16.msra.mxu0 %v299
    %318 = vmatprep.subr.bf16.mxu0 0
    %319 = vmatpush1.bf16.msra.mxu0 0
    %320 = vmatprep.subr.bf16.mxu0 0
    %321 = vmatpush1.bf16.msra.mxu0 0
    %322 = vmatprep.subr.bf16.mxu0 0
    %323 = vmatpush1.bf16.msra.mxu0 0
    %324 = vmatprep.subr.bf16.mxu0 0
    %325 = vmatpush1.bf16.msra.mxu0 0
    %326 = vmatprep.subr.bf16.mxu0 0
    %327 = vmatpush1.bf16.msra.mxu0 0
    %328 = vmatprep.subr.bf16.mxu0 0
    %329 = vmatpush1.bf16.msra.mxu0 0
    %330 = vmatprep.subr.bf16.mxu0 0
    %331 = vmatpush1.bf16.msra.mxu0 0
    %332 = vmatprep.subr.bf16.mxu0 0
    %333 = vmatpush1.bf16.msra.mxu0 0
    %334 = vmatprep.subr.bf16.mxu0 0
    %335 = vmatpush1.bf16.msra.mxu0 0
    %336 = vmatprep.subr.bf16.mxu0 0
    %337 = vmatpush1.bf16.msra.mxu0 0
    %338 = vmatprep.subr.bf16.mxu0 0
    %339 = vmatpush1.bf16.msra.mxu0 0
    %340 = vmatprep.subr.bf16.mxu0 0
    %341 = vmatpush1.bf16.msra.mxu0 0
    %342 = vmatprep.subr.bf16.mxu0 0
    %343 = vmatpush1.bf16.msra.mxu0 0
    %344 = vmatprep.subr.bf16.mxu0 0
    %345 = vmatpush1.bf16.msra.mxu0 0
    %346 = vmatprep.mubr.bf16.mxu0 0
    %347 = vmatmul.mubr.bf16.gmra.mrb[0].mxu0 %v312
    %v348 = vpop.f32.mrb[0].mxu0
    %v349 = vadd.f32 %v310, %v348
    %v350 = vpop.f32.mrb[0].mxu0
    %v351 = vpop.f32.mrb[0].mxu0
    %v352 = vpop.f32.mrb[0].mxu0
    %353 = vdwg.mxu0
    %v354 = vxor.u32 %v349, 2147483648
    %v355 = vmul.f32 %v354, 1.442695
    %v356 = vpow.pop %v355
    %v357 = vadd.f32 %v356, 1.0
    %v358 = vrcp.pop %v357
    %v359 = vmul.f32 1.0, %v358
    %vm360 = vcmask 57344
    %361 = vst.msk [vmem:[#allocation3] sm:$0x1] %vm360, %v359
    // Predicated region
    $region30: #{tpu_custom_call.1} parent=1 // pred_check
      _
    $region31: #{tpu_custom_call.1} parent=1 // pred_check_branch
      %363 = sbr.rel (0) target = $region33
    $region32: #{tpu_custom_call.1} parent=1 // pred_region
      %s365 = ssub.s32 16, 16
      %366 = vsyncadd [#allocation4], %s365
      %s368 = sshll.u32 [#allocation3], 4
      %s369 = int_to_ptr.vmem [resolvable:$true] %s368
      %371 = dma.vmem_to_hbm [thread:$0]  %s369, 16, %s7, [#allocation4]
    $region33: #{tpu_custom_call.1} parent=1 // pred_fallthru
      _
    // Predicated region
    $region34: #{tpu_custom_call.1} parent=1 // pred_check
      _
    $region35: #{tpu_custom_call.1} parent=1 // pred_check_branch
      %373 = sbr.rel (0) target = $region37
    $region36: #{tpu_custom_call.1} parent=1 // pred_region
      %374 = dma.done [#allocation4], 16
    $region37: #{tpu_custom_call.1} parent=1 // pred_fallthru
      _
    %375 = vsyncpa [#allocation4], 1

</llo_original>
